<compile_context>
chip_gen: v7x
topology: tpu7x:2x2x1
jax: 0.10.0
libtpu: 0.0.40
codegen_flags: <defaults>
</compile_context>

<pallas_src>
import math
from functools import partial

import jax
import jax.numpy as jnp
from jax.experimental import pallas as pl
from jax.experimental.pallas import tpu as pltpu


def _round_up(x, m):
    return ((x + m - 1) // m) * m


def _baseline_kernel(x_ref, w1_ref, b1_ref, w2_ref, b2_ref,
                     gamma_ref, beta_ref, wc_ref, bc_ref, out_ref):
    f32 = jnp.float32

    # ---- visual_feature_extractor ----
    # Linear(image_input_dim -> hidden). MXU consumes operands in their stored
    # dtype (bf16 fast path when params are bf16), accumulates in f32.
    h = jnp.dot(x_ref[...].astype(w1_ref.dtype), w1_ref[...],
                preferred_element_type=f32) + b1_ref[...].astype(f32)

    # GELU: exact erf form (matches nn.GELU default). erf runs on the EUP.
    h = 0.5 * h * (1.0 + jax.lax.erf(h * (1.0 / math.sqrt(2.0))))

    # Dropout(p=0.2) -> identity at inference time.

    # Linear(hidden -> hidden)
    h = jnp.dot(h.astype(w2_ref.dtype), w2_ref[...],
                preferred_element_type=f32) + b2_ref[...].astype(f32)

    # LayerNorm(hidden), eps=1e-5, affine. Single-pass (biased) variance.
    mean = jnp.mean(h, axis=-1, keepdims=True)
    mean_sq = jnp.mean(h * h, axis=-1, keepdims=True)
    var = jnp.maximum(mean_sq - mean * mean, 0.0)
    h = (h - mean) * jax.lax.rsqrt(var + 1e-5)
    h = h * gamma_ref[...].astype(f32) + beta_ref[...].astype(f32)

    # ---- all classifier heads fused into one lane-padded matmul ----
    out_ref[...] = (jnp.dot(h.astype(wc_ref.dtype), wc_ref[...],
                            preferred_element_type=f32)
                    + bc_ref[...].astype(f32))


def baseline_classifier_forward(image_embeddings, params, attributes,
                                num_classes_dict, tile_b=256):
    """Fused Pallas forward. Returns (logits_dict, {}) like the PyTorch module."""
    x = image_embeddings
    B, Din = x.shape
    H = params["w1"].shape[1]
    C = params["wc"].shape[1]                       # packed head width
    total_classes = sum(num_classes_dict[a] for a in attributes)

    # ---- layout plumbing (all semantics-preserving zero padding) ----
    Din_p = _round_up(Din, 128)                     # MXU-aligned contraction dim
    C_p = _round_up(C, 128)                         # lane-dense output slab

    x_itemsize = jnp.dtype(x.dtype).itemsize
    p_itemsize = jnp.dtype(params["w1"].dtype).itemsize
    # Resident parameters (one copy each, live for the whole kernel).
    param_bytes = (Din_p * H + H * H + H * C_p + 4 * H + C_p) * p_itemsize

    # Pick the largest batch tile (cap `tile_b`) whose double-buffered
    # in/out tiles + resident params leave headroom inside v7x's 64 MiB VMEM.
    vmem_budget = 48 << 20
    TILE_B = min(tile_b, _round_up(B, 8))
    while TILE_B > 8:
        tile_bytes = 2 * TILE_B * (Din_p * x_itemsize + C_p * 4)
        if param_bytes + tile_bytes <= vmem_budget:
            break
        TILE_B //= 2
    TILE_B = max(TILE_B, 8)
    B_p = _round_up(B, TILE_B)

    w1 = params["w1"]
    if Din_p != Din:
        x = jnp.pad(x, ((0, 0), (0, Din_p - Din)))
        w1 = jnp.pad(w1, ((0, Din_p - Din), (0, 0)))
    if B_p != B:
        x = jnp.pad(x, ((0, B_p - B), (0, 0)))
    wc, bc = params["wc"], params["bc"]
    if C_p != C:
        wc = jnp.pad(wc, ((0, 0), (0, C_p - C)))
        bc = jnp.pad(bc, ((0, 0), (0, C_p - C)))

    grid = (B_p // TILE_B,)

    # Resident parameter spec: same block for every grid step -> no re-DMA.
    def _resident(shape):
        return pl.BlockSpec(shape, lambda i: (0, 0))

    in_specs = [
        pl.BlockSpec((TILE_B, Din_p), lambda i: (i, 0)),   # x tile
        _resident((Din_p, H)),                             # w1
        _resident((1, H)),                                 # b1
        _resident((H, H)),                                 # w2
        _resident((1, H)),                                 # b2
        _resident((1, H)),                                 # ln gamma
        _resident((1, H)),                                 # ln beta
        _resident((H, C_p)),                               # packed heads wc
        _resident((1, C_p)),                               # packed heads bc
    ]
    out_specs = pl.BlockSpec((TILE_B, C_p), lambda i: (i, 0))

    bytes_accessed = (
        x.size * x_itemsize + param_bytes + B_p * C_p * 4
    )
    cost = pl.CostEstimate(
        flops=2 * B_p * (Din_p * H + H * H + H * C_p),
        transcendentals=B_p * H,                           # erf in GELU
        bytes_accessed=int(bytes_accessed),
    )

    # Double-buffered tiles + resident params, with generous headroom.
    tile_bytes = 2 * TILE_B * (Din_p * x_itemsize + C_p * 4)
    vmem_limit = int(min(max(2 * (param_bytes + tile_bytes), 32 << 20), 96 << 20))

    logits_all = pl.pallas_call(
        _baseline_kernel,
        out_shape=jax.ShapeDtypeStruct((B_p, C_p), jnp.float32),
        grid=grid,
        in_specs=in_specs,
        out_specs=out_specs,
        compiler_params=pltpu.CompilerParams(
            dimension_semantics=("parallel",),
            vmem_limit_bytes=vmem_limit),
        cost_estimate=cost,
    )(x, w1, params["b1"], params["w2"], params["b2"],
      params["ln_gamma"], params["ln_beta"], wc, bc)

    logits_all = logits_all[:B, :total_classes]

    logits_dict = {}
    off = 0
    for attr in attributes:
        n = num_classes_dict[attr]
        logits_dict[attr] = logits_all[:, off:off + n]
        off += n
    empty_dict = {}
    return logits_dict, empty_dict


def init_params(key, image_input_dim, hidden_dim, attributes, num_classes_dict,
                dtype=jnp.float32):
    """Deterministic synthetic parameter init (PyTorch-like uniform ranges)."""
    ks = jax.random.split(key, 8)

    def lin(kw, kb, fan_in, fan_out):
        bound = 1.0 / math.sqrt(fan_in)
        w = jax.random.uniform(kw, (fan_in, fan_out), jnp.float32, -bound, bound)
        b = jax.random.uniform(kb, (1, fan_out), jnp.float32, -bound, bound)
        return w, b

    w1, b1 = lin(ks[0], ks[1], image_input_dim, hidden_dim)
    w2, b2 = lin(ks[2], ks[3], hidden_dim, hidden_dim)
    ln_gamma = jnp.ones((1, hidden_dim), jnp.float32)
    ln_beta = jnp.zeros((1, hidden_dim), jnp.float32)

    # Pack every attribute head [hidden, n_classes] along the output axis.
    head_keys = jax.random.split(ks[4], 2 * len(attributes))
    wcs, bcs = [], []
    for i, attr in enumerate(attributes):
        n = num_classes_dict[attr]
        w, b = lin(head_keys[2 * i], head_keys[2 * i + 1], hidden_dim, n)
        wcs.append(w)
        bcs.append(b)
    wc = jnp.concatenate(wcs, axis=1)
    bc = jnp.concatenate(bcs, axis=1)

    p = {"w1": w1, "b1": b1, "w2": w2, "b2": b2,
         "ln_gamma": ln_gamma, "ln_beta": ln_beta, "wc": wc, "bc": bc}
    return {k: v.astype(dtype) for k, v in p.items()}


def _reference_forward(x, params, attributes, num_classes_dict):
    """Pure-JAX f32 reference for correctness checking."""
    f32 = jnp.float32
    h = x.astype(f32) @ params["w1"].astype(f32) + params["b1"].astype(f32)
    h = 0.5 * h * (1.0 + jax.lax.erf(h / math.sqrt(2.0)))
    h = h @ params["w2"].astype(f32) + params["b2"].astype(f32)
    mean = jnp.mean(h, axis=-1, keepdims=True)
    var = jnp.mean((h - mean) ** 2, axis=-1, keepdims=True)
    h = (h - mean) * jax.lax.rsqrt(var + 1e-5)
    h = h * params["ln_gamma"].astype(f32) + params["ln_beta"].astype(f32)
    out = h @ params["wc"].astype(f32) + params["bc"].astype(f32)
    res, off = {}, 0
    for a in attributes:
        n = num_classes_dict[a]
        res[a] = out[:, off:off + n]
        off += n
    return res


if __name__ == "__main__":
    # Small, module-consistent shapes.
    batch = 2
    image_input_dim = 32
    hidden_dim = 32
    attributes = ["color", "shape", "size"]
    num_classes_dict = {"color": 5, "shape": 7, "size": 3}

    key = jax.random.PRNGKey(0)
    k_x, k_p = jax.random.split(key)
    x = jax.random.normal(k_x, (batch, image_input_dim), jnp.float32)

    # ---- f32 path: tight correctness check against pure-JAX reference ----
    params = init_params(k_p, image_input_dim, hidden_dim, attributes,
                         num_classes_dict, dtype=jnp.float32)
    fwd = jax.jit(partial(baseline_classifier_forward,
                          attributes=attributes,
                          num_classes_dict=num_classes_dict))
    logits_dict, empty_dict = fwd(x, params)
    jax.block_until_ready(logits_dict)

    ref = _reference_forward(x, params, attributes, num_classes_dict)
    for a in attributes:
        assert logits_dict[a].shape == (batch, num_classes_dict[a])
        assert jnp.allclose(logits_dict[a], ref[a], atol=1e-4, rtol=1e-4), a
    assert empty_dict == {}

    # ---- bf16 path: exercise the bf16 MXU fast path (shape / finiteness) ----
    params_bf16 = {k: v.astype(jnp.bfloat16) for k, v in params.items()}
    logits_bf16, _ = fwd(x.astype(jnp.bfloat16), params_bf16)
    jax.block_until_ready(logits_bf16)
    for a in attributes:
        assert logits_bf16[a].shape == (batch, num_classes_dict[a])
        assert bool(jnp.all(jnp.isfinite(logits_bf16[a])))

    print("KERNEL_OK")
</pallas_src>

<mosaic_0001>
module attributes {stable_mosaic.version = 11 : i64} {
  func.func @_baseline_kernel(%arg0: i32, %arg1: memref<8x128xf32, #tpu.memory_space<vmem>>, %arg2: memref<128x32xf32, #tpu.memory_space<vmem>>, %arg3: memref<1x32xf32, #tpu.memory_space<vmem>>, %arg4: memref<32x32xf32, #tpu.memory_space<vmem>>, %arg5: memref<1x32xf32, #tpu.memory_space<vmem>>, %arg6: memref<1x32xf32, #tpu.memory_space<vmem>>, %arg7: memref<1x32xf32, #tpu.memory_space<vmem>>, %arg8: memref<32x128xf32, #tpu.memory_space<vmem>>, %arg9: memref<1x128xf32, #tpu.memory_space<vmem>>, %arg10: memref<8x128xf32, #tpu.memory_space<vmem>>) attributes {dimension_semantics = [#tpu.dimension_semantics<parallel>], iteration_bounds = array<i64: 1>, scalar_prefetch = 0 : i64, scratch_operands = 0 : i64, tpu.core_type = #tpu.core_type<tc>, window_params = [{transform_indices = @transform_0, window_bounds = array<i64: 8, 128>}, {pipeline_mode = #tpu.pipeline_mode<synchronous>, transform_indices = @transform_1, window_bounds = array<i64: 128, 32>}, {pipeline_mode = #tpu.pipeline_mode<synchronous>, transform_indices = @transform_2, window_bounds = array<i64: 1, 32>}, {pipeline_mode = #tpu.pipeline_mode<synchronous>, transform_indices = @transform_3, window_bounds = array<i64: 32, 32>}, {pipeline_mode = #tpu.pipeline_mode<synchronous>, transform_indices = @transform_4, window_bounds = array<i64: 1, 32>}, {pipeline_mode = #tpu.pipeline_mode<synchronous>, transform_indices = @transform_5, window_bounds = array<i64: 1, 32>}, {pipeline_mode = #tpu.pipeline_mode<synchronous>, transform_indices = @transform_6, window_bounds = array<i64: 1, 32>}, {pipeline_mode = #tpu.pipeline_mode<synchronous>, transform_indices = @transform_7, window_bounds = array<i64: 32, 128>}, {pipeline_mode = #tpu.pipeline_mode<synchronous>, transform_indices = @transform_8, window_bounds = array<i64: 1, 128>}, {transform_indices = @transform_9, window_bounds = array<i64: 8, 128>}]} {
    %c0 = arith.constant 0 : index
    %c0_0 = arith.constant 0 : index
    %0 = vector.load %arg1[%c0, %c0_0] : memref<8x128xf32, #tpu.memory_space<vmem>>, vector<8x128xf32>
    %c0_1 = arith.constant 0 : index
    %c0_2 = arith.constant 0 : index
    %1 = vector.load %arg2[%c0_1, %c0_2] : memref<128x32xf32, #tpu.memory_space<vmem>>, vector<128x32xf32>
    %cst = arith.constant dense<0.000000e+00> : vector<8x32xf32>
    %2 = tpu.matmul %0, %1, %cst {dimension_numbers = #tpu.dot_dimension_numbers<[1], [0], [0], [1], [0, 0, 1, 1], [], []>} : vector<8x128xf32>, vector<128x32xf32>, vector<8x32xf32> -> vector<8x32xf32>
    %c0_3 = arith.constant 0 : index
    %c0_4 = arith.constant 0 : index
    %3 = vector.load %arg3[%c0_3, %c0_4] : memref<1x32xf32, #tpu.memory_space<vmem>>, vector<1x32xf32>
    %4 = vector.broadcast %3 : vector<1x32xf32> to vector<8x32xf32>
    %5 = arith.addf %2, %4 : vector<8x32xf32>
    %cst_5 = arith.constant 5.000000e-01 : f32
    %6 = vector.broadcast %cst_5 : f32 to vector<8x32xf32>
    %7 = arith.mulf %6, %5 : vector<8x32xf32>
    %cst_6 = arith.constant 0.707106769 : f32
    %8 = vector.broadcast %cst_6 : f32 to vector<8x32xf32>
    %9 = arith.mulf %5, %8 : vector<8x32xf32>
    %10 = math.erf %9 : vector<8x32xf32>
    %cst_7 = arith.constant 1.000000e+00 : f32
    %11 = vector.broadcast %cst_7 : f32 to vector<8x32xf32>
    %12 = arith.addf %11, %10 : vector<8x32xf32>
    %13 = arith.mulf %7, %12 : vector<8x32xf32>
    %c0_8 = arith.constant 0 : index
    %c0_9 = arith.constant 0 : index
    %14 = vector.load %arg4[%c0_8, %c0_9] : memref<32x32xf32, #tpu.memory_space<vmem>>, vector<32x32xf32>
    %cst_10 = arith.constant dense<0.000000e+00> : vector<8x32xf32>
    %15 = tpu.matmul %13, %14, %cst_10 {dimension_numbers = #tpu.dot_dimension_numbers<[1], [0], [0], [1], [0, 0, 1, 1], [], []>} : vector<8x32xf32>, vector<32x32xf32>, vector<8x32xf32> -> vector<8x32xf32>
    %c0_11 = arith.constant 0 : index
    %c0_12 = arith.constant 0 : index
    %16 = vector.load %arg5[%c0_11, %c0_12] : memref<1x32xf32, #tpu.memory_space<vmem>>, vector<1x32xf32>
    %17 = vector.broadcast %16 : vector<1x32xf32> to vector<8x32xf32>
    %18 = arith.addf %15, %17 : vector<8x32xf32>
    %cst_13 = arith.constant dense<0.000000e+00> : vector<8xf32>
    %19 = vector.multi_reduction <add>, %18, %cst_13 [1] : vector<8x32xf32> to vector<8xf32>
    %20 = vector.shape_cast %19 : vector<8xf32> to vector<8x1xf32>
    %cst_14 = arith.constant 3.200000e+01 : f32
    %21 = vector.broadcast %cst_14 : f32 to vector<8x1xf32>
    %22 = arith.divf %20, %21 : vector<8x1xf32>
    %23 = arith.mulf %18, %18 : vector<8x32xf32>
    %cst_15 = arith.constant dense<0.000000e+00> : vector<8xf32>
    %24 = vector.multi_reduction <add>, %23, %cst_15 [1] : vector<8x32xf32> to vector<8xf32>
    %25 = vector.shape_cast %24 : vector<8xf32> to vector<8x1xf32>
    %cst_16 = arith.constant 3.200000e+01 : f32
    %26 = vector.broadcast %cst_16 : f32 to vector<8x1xf32>
    %27 = arith.divf %25, %26 : vector<8x1xf32>
    %28 = arith.mulf %22, %22 : vector<8x1xf32>
    %29 = arith.subf %27, %28 : vector<8x1xf32>
    %cst_17 = arith.constant 0.000000e+00 : f32
    %30 = vector.broadcast %cst_17 : f32 to vector<8x1xf32>
    %31 = arith.maximumf %29, %30 : vector<8x1xf32>
    %32 = vector.broadcast %22 : vector<8x1xf32> to vector<8x32xf32>
    %33 = arith.subf %18, %32 : vector<8x32xf32>
    %cst_18 = arith.constant 9.99999974E-6 : f32
    %34 = vector.broadcast %cst_18 : f32 to vector<8x1xf32>
    %35 = arith.addf %31, %34 : vector<8x1xf32>
    %36 = math.rsqrt %35 : vector<8x1xf32>
    %37 = vector.broadcast %36 : vector<8x1xf32> to vector<8x32xf32>
    %38 = arith.mulf %33, %37 : vector<8x32xf32>
    %c0_19 = arith.constant 0 : index
    %c0_20 = arith.constant 0 : index
    %39 = vector.load %arg6[%c0_19, %c0_20] : memref<1x32xf32, #tpu.memory_space<vmem>>, vector<1x32xf32>
    %40 = vector.broadcast %39 : vector<1x32xf32> to vector<8x32xf32>
    %41 = arith.mulf %38, %40 : vector<8x32xf32>
    %c0_21 = arith.constant 0 : index
    %c0_22 = arith.constant 0 : index
    %42 = vector.load %arg7[%c0_21, %c0_22] : memref<1x32xf32, #tpu.memory_space<vmem>>, vector<1x32xf32>
    %43 = vector.broadcast %42 : vector<1x32xf32> to vector<8x32xf32>
    %44 = arith.addf %41, %43 : vector<8x32xf32>
    %c0_23 = arith.constant 0 : index
    %c0_24 = arith.constant 0 : index
    %45 = vector.load %arg8[%c0_23, %c0_24] : memref<32x128xf32, #tpu.memory_space<vmem>>, vector<32x128xf32>
    %cst_25 = arith.constant dense<0.000000e+00> : vector<8x128xf32>
    %46 = tpu.matmul %44, %45, %cst_25 {dimension_numbers = #tpu.dot_dimension_numbers<[1], [0], [0], [1], [0, 0, 1, 1], [], []>} : vector<8x32xf32>, vector<32x128xf32>, vector<8x128xf32> -> vector<8x128xf32>
    %c0_26 = arith.constant 0 : index
    %c0_27 = arith.constant 0 : index
    %47 = vector.load %arg9[%c0_26, %c0_27] : memref<1x128xf32, #tpu.memory_space<vmem>>, vector<1x128xf32>
    %48 = vector.broadcast %47 : vector<1x128xf32> to vector<8x128xf32>
    %49 = arith.addf %46, %48 : vector<8x128xf32>
    %c0_28 = arith.constant 0 : index
    %c0_29 = arith.constant 0 : index
    %50 = vector.load %arg10[%c0_28, %c0_29] : memref<8x128xf32, #tpu.memory_space<vmem>>, vector<8x128xf32>
    tpu.vector_store %arg10[%c0_28, %c0_29], %49 {strides = array<i32>} : memref<8x128xf32, #tpu.memory_space<vmem>>, vector<8x128xf32>,
    return
  }
  func.func @transform_0(%arg0: i32) -> (i32, i32) {
    %c0_i32 = arith.constant 0 : i32
    %c0_i32_0 = arith.constant 0 : i32
    return %arg0, %c0_i32 : i32, i32
  }
  func.func @transform_1(%arg0: i32) -> (i32, i32) {
    %c0_i32 = arith.constant 0 : i32
    %c0_i32_0 = arith.constant 0 : i32
    %c0_i32_1 = arith.constant 0 : i32
    return %c0_i32, %c0_i32_0 : i32, i32
  }
  func.func @transform_2(%arg0: i32) -> (i32, i32) {
    %c0_i32 = arith.constant 0 : i32
    %c0_i32_0 = arith.constant 0 : i32
    %c0_i32_1 = arith.constant 0 : i32
    return %c0_i32, %c0_i32_0 : i32, i32
  }
  func.func @transform_3(%arg0: i32) -> (i32, i32) {
    %c0_i32 = arith.constant 0 : i32
    %c0_i32_0 = arith.constant 0 : i32
    %c0_i32_1 = arith.constant 0 : i32
    return %c0_i32, %c0_i32_0 : i32, i32
  }
  func.func @transform_4(%arg0: i32) -> (i32, i32) {
    %c0_i32 = arith.constant 0 : i32
    %c0_i32_0 = arith.constant 0 : i32
    %c0_i32_1 = arith.constant 0 : i32
    return %c0_i32, %c0_i32_0 : i32, i32
  }
  func.func @transform_5(%arg0: i32) -> (i32, i32) {
    %c0_i32 = arith.constant 0 : i32
    %c0_i32_0 = arith.constant 0 : i32
    %c0_i32_1 = arith.constant 0 : i32
    return %c0_i32, %c0_i32_0 : i32, i32
  }
  func.func @transform_6(%arg0: i32) -> (i32, i32) {
    %c0_i32 = arith.constant 0 : i32
    %c0_i32_0 = arith.constant 0 : i32
    %c0_i32_1 = arith.constant 0 : i32
    return %c0_i32, %c0_i32_0 : i32, i32
  }
  func.func @transform_7(%arg0: i32) -> (i32, i32) {
    %c0_i32 = arith.constant 0 : i32
    %c0_i32_0 = arith.constant 0 : i32
    %c0_i32_1 = arith.constant 0 : i32
    return %c0_i32, %c0_i32_0 : i32, i32
  }
  func.func @transform_8(%arg0: i32) -> (i32, i32) {
    %c0_i32 = arith.constant 0 : i32
    %c0_i32_0 = arith.constant 0 : i32
    %c0_i32_1 = arith.constant 0 : i32
    return %c0_i32, %c0_i32_0 : i32, i32
  }
  func.func @transform_9(%arg0: i32) -> (i32, i32) {
    %c0_i32 = arith.constant 0 : i32
    %c0_i32_0 = arith.constant 0 : i32
    return %arg0, %c0_i32 : i32, i32
  }
}

</mosaic_0001>

<llo_original>
// kernel: baseline_classifier_forward.1
$region0: #{baseline_classifier_forward.1}
  #allocation0 [shape = 'u32[]', space=smem, size = 0x4, offset = 0x4, fixed_abs, tag = 'smem constant byte address 0x4 - core index']
  #allocation1 [shape = 'u32[144,128]{1,0:T(1,128)}', space=vmem, size = 0x12000, scoped, tag = 'internal scratch']
  %s0 = inlined_call_operand.vmem [shape: f32[8,128], index: 0, kind: input, shape index: {}]
  %s1 = inlined_call_operand.vmem [shape: f32[128,32], index: 1, kind: input, shape index: {}]
  %s2 = inlined_call_operand.vmem [shape: f32[1,32], index: 2, kind: input, shape index: {}]
  %s3 = inlined_call_operand.vmem [shape: f32[32,32], index: 3, kind: input, shape index: {}]
  %s4 = inlined_call_operand.vmem [shape: f32[1,32], index: 4, kind: input, shape index: {}]
  %s5 = inlined_call_operand.vmem [shape: f32[1,32], index: 5, kind: input, shape index: {}]
  %s6 = inlined_call_operand.vmem [shape: f32[1,32], index: 6, kind: input, shape index: {}]
  %s7 = inlined_call_operand.vmem [shape: f32[32,128], index: 7, kind: input, shape index: {}]
  %s8 = inlined_call_operand.vmem [shape: f32[1,128], index: 8, kind: input, shape index: {}]
  %s9 = inlined_call_operand.vmem [shape: f32[8,128], index: 9, kind: output, shape index: {}]
  %s10 = sld [smem:[#allocation0]]
  $region46: #{baseline_classifier_forward.1} parent=0
    _
  %s12 = ssub.s32 1, %s10
  %s13 = scalar_select 0, %s12, %s10
  // Predicated region
  $region2: #{baseline_classifier_forward.1} parent=0 // pred_check
    _
  $region3: #{baseline_classifier_forward.1} parent=0 // pred_check_branch
    %15 = sbr.rel (0) target = $region5
  $region4: #{baseline_classifier_forward.1} parent=0 // pred_region
    _
  $region5: #{baseline_classifier_forward.1} parent=0 // pred_fallthru
    _
  // Predicated region
  $region6: #{baseline_classifier_forward.1} parent=0 // pred_check
    _
  $region7: #{baseline_classifier_forward.1} parent=0 // pred_check_branch
    %17 = sbr.rel (0) target = $region9
  $region8: #{baseline_classifier_forward.1} parent=0 // pred_region
    _
  $region9: #{baseline_classifier_forward.1} parent=0 // pred_fallthru
    _
  // Predicated region
  $region10: #{baseline_classifier_forward.1} parent=0 // pred_check
    _
  $region11: #{baseline_classifier_forward.1} parent=0 // pred_check_branch
    %19 = sbr.rel (0) target = $region13
  $region12: #{baseline_classifier_forward.1} parent=0 // pred_region
    _
  $region13: #{baseline_classifier_forward.1} parent=0 // pred_fallthru
    _
  // Predicated region
  $region14: #{baseline_classifier_forward.1} parent=0 // pred_check
    _
  $region15: #{baseline_classifier_forward.1} parent=0 // pred_check_branch
    %21 = sbr.rel (0) target = $region17
  $region16: #{baseline_classifier_forward.1} parent=0 // pred_region
    _
  $region17: #{baseline_classifier_forward.1} parent=0 // pred_fallthru
    _
  // Predicated region
  $region18: #{baseline_classifier_forward.1} parent=0 // pred_check
    _
  $region19: #{baseline_classifier_forward.1} parent=0 // pred_check_branch
    %23 = sbr.rel (0) target = $region21
  $region20: #{baseline_classifier_forward.1} parent=0 // pred_region
    _
  $region21: #{baseline_classifier_forward.1} parent=0 // pred_fallthru
    _
  // Predicated region
  $region22: #{baseline_classifier_forward.1} parent=0 // pred_check
    _
  $region23: #{baseline_classifier_forward.1} parent=0 // pred_check_branch
    %25 = sbr.rel (0) target = $region25
  $region24: #{baseline_classifier_forward.1} parent=0 // pred_region
    _
  $region25: #{baseline_classifier_forward.1} parent=0 // pred_fallthru
    _
  // Predicated region
  $region26: #{baseline_classifier_forward.1} parent=0 // pred_check
    _
  $region27: #{baseline_classifier_forward.1} parent=0 // pred_check_branch
    %27 = sbr.rel (0) target = $region29
  $region28: #{baseline_classifier_forward.1} parent=0 // pred_region
    _
  $region29: #{baseline_classifier_forward.1} parent=0 // pred_fallthru
    _
  // Predicated region
  $region30: #{baseline_classifier_forward.1} parent=0 // pred_check
    _
  $region31: #{baseline_classifier_forward.1} parent=0 // pred_check_branch
    %29 = sbr.rel (0) target = $region33
  $region32: #{baseline_classifier_forward.1} parent=0 // pred_region
    _
  $region33: #{baseline_classifier_forward.1} parent=0 // pred_fallthru
    _
  // Predicated region
  $region34: #{baseline_classifier_forward.1} parent=0 // pred_check
    _
  $region35: #{baseline_classifier_forward.1} parent=0 // pred_check_branch
    %31 = sbr.rel (0) target = $region37
  $region36: #{baseline_classifier_forward.1} parent=0 // pred_region
    _
  $region37: #{baseline_classifier_forward.1} parent=0 // pred_fallthru
    _
  %v32 = vld [vmem:[%s0] sm:$0xff]
  %v33 = vld [vmem:[%s1] sm:$0xff]
  %v34 = vld [vmem:[%s1 + $0x8] sm:$0xff]
  %v35 = vld [vmem:[%s1 + $0x10] sm:$0xff]
  %v36 = vld [vmem:[%s1 + $0x18] sm:$0xff]
  %v37 = vld [vmem:[%s1 + $0x20] sm:$0xff]
  %v38 = vld [vmem:[%s1 + $0x28] sm:$0xff]
  %v39 = vld [vmem:[%s1 + $0x30] sm:$0xff]
  %v40 = vld [vmem:[%s1 + $0x38] sm:$0xff]
  %v41 = vld [vmem:[%s1 + $0x40] sm:$0xff]
  %v42 = vld [vmem:[%s1 + $0x48] sm:$0xff]
  %v43 = vld [vmem:[%s1 + $0x50] sm:$0xff]
  %v44 = vld [vmem:[%s1 + $0x58] sm:$0xff]
  %v45 = vld [vmem:[%s1 + $0x60] sm:$0xff]
  %v46 = vld [vmem:[%s1 + $0x68] sm:$0xff]
  %v47 = vld [vmem:[%s1 + $0x70] sm:$0xff]
  %v48 = vld [vmem:[%s1 + $0x78] sm:$0xff]
  %v49 = vld [vmem:[%s2] sm:$0x1]
  %v51 = vlaneseq
  %v52 = vshrl.u32 %v51, 7
  %v53 = vsub.s32 0, %v52
  %v54 = vrot.slane %v49, %v53
  %56 = vmatprep.subr.mxu0 0.0
  %57 = vmatpush1.msra.mxu0 %v33
  %58 = vmatprep.subr.mxu0 0.0
  %59 = vmatpush1.msra.mxu0 %v34
  %60 = vmatprep.subr.mxu0 0.0
  %61 = vmatpush1.msra.mxu0 %v35
  %62 = vmatprep.subr.mxu0 0.0
  %63 = vmatpush1.msra.mxu0 %v36
  %64 = vmatprep.subr.mxu0 0.0
  %65 = vmatpush1.msra.mxu0 %v37
  %66 = vmatprep.subr.mxu0 0.0
  %67 = vmatpush1.msra.mxu0 %v38
  %68 = vmatprep.subr.mxu0 0.0
  %69 = vmatpush1.msra.mxu0 %v39
  %70 = vmatprep.subr.mxu0 0.0
  %71 = vmatpush1.msra.mxu0 %v40
  %72 = vmatprep.subr.mxu0 0.0
  %73 = vmatpush1.msra.mxu0 %v41
  %74 = vmatprep.subr.mxu0 0.0
  %75 = vmatpush1.msra.mxu0 %v42
  %76 = vmatprep.subr.mxu0 0.0
  %77 = vmatpush1.msra.mxu0 %v43
  %78 = vmatprep.subr.mxu0 0.0
  %79 = vmatpush1.msra.mxu0 %v44
  %80 = vmatprep.subr.mxu0 0.0
  %81 = vmatpush1.msra.mxu0 %v45
  %82 = vmatprep.subr.mxu0 0.0
  %83 = vmatpush1.msra.mxu0 %v46
  %84 = vmatprep.subr.mxu0 0.0
  %85 = vmatpush1.msra.mxu0 %v47
  %86 = vmatprep.subr.mxu0 0.0
  %87 = vmatpush1.msra.mxu0 %v48
  %88 = vmatprep.subr.mxu0 0.0
  %89 = vmatpush1.msra.mxu0 0.0
  %90 = vmatprep.subr.mxu0 0.0
  %91 = vmatpush1.msra.mxu0 0.0
  %92 = vmatprep.subr.mxu0 0.0
  %93 = vmatpush1.msra.mxu0 0.0
  %94 = vmatprep.subr.mxu0 0.0
  %95 = vmatpush1.msra.mxu0 0.0
  %96 = vmatprep.subr.mxu0 0.0
  %97 = vmatpush1.msra.mxu0 0.0
  %98 = vmatprep.subr.mxu0 0.0
  %99 = vmatpush1.msra.mxu0 0.0
  %100 = vmatprep.subr.mxu0 0.0
  %101 = vmatpush1.msra.mxu0 0.0
  %102 = vmatprep.subr.mxu0 0.0
  %103 = vmatpush1.msra.mxu0 0.0
  %104 = vmatprep.subr.mxu0 0.0
  %105 = vmatpush1.msra.mxu0 0.0
  %106 = vmatprep.subr.mxu0 0.0
  %107 = vmatpush1.msra.mxu0 0.0
  %108 = vmatprep.subr.mxu0 0.0
  %109 = vmatpush1.msra.mxu0 0.0
  %110 = vmatprep.subr.mxu0 0.0
  %111 = vmatpush1.msra.mxu0 0.0
  %112 = vmatprep.subr.mxu0 0.0
  %113 = vmatpush1.msra.mxu0 0.0
  %114 = vmatprep.subr.mxu0 0.0
  %115 = vmatpush1.msra.mxu0 0.0
  %116 = vmatprep.subr.mxu0 0.0
  %117 = vmatpush1.msra.mxu0 0.0
  %118 = vmatprep.subr.mxu0 0.0
  %119 = vmatpush1.msra.mxu0 0.0
  %120 = vmatprep.mubr.f32.mxu0 0.0
  %121 = vmatmul.mubr.f32.gmra.mrb[0].mxu0 %v32
  %v122 = vpop.f32.mrb[0].mxu0
  %v123 = vadd.f32 %v54, %v122
  %v124 = vpop.f32.mrb[0].mxu0
  %125 = vdwg.mxu0
  %v126 = vmul.f32 %v123, 0.5
  %v127 = vmul.f32 %v123, 0.70710677
  %v128 = verf.f32.pop %v127
  %v129 = vadd.f32 %v128, 1.0
  %v130 = vmul.f32 %v126, %v129
  %v131 = vld [vmem:[%s3] sm:$0xff]
  %v132 = vld [vmem:[%s3 + $0x8] sm:$0xff]
  %v133 = vld [vmem:[%s3 + $0x10] sm:$0xff]
  %v134 = vld [vmem:[%s3 + $0x18] sm:$0xff]
  %v135 = vld [vmem:[%s4] sm:$0x1]
  %v137 = vlaneseq
  %v138 = vshrl.u32 %v137, 7
  %v139 = vsub.s32 0, %v138
  %v140 = vrot.slane %v135, %v139
  %vm142 = vcmask 261120
  %v144 = vsel %vm142, %v130, 0
  %146 = vmatprep.subr.mxu0 0.0
  %147 = vmatpush1.msra.mxu0 %v131
  %148 = vmatprep.subr.mxu0 0.0
  %149 = vmatpush1.msra.mxu0 %v132
  %150 = vmatprep.subr.mxu0 0.0
  %151 = vmatpush1.msra.mxu0 %v133
  %152 = vmatprep.subr.mxu0 0.0
  %153 = vmatpush1.msra.mxu0 %v134
  %154 = vmatprep.subr.mxu0 0.0
  %155 = vmatpush1.msra.mxu0 0.0
  %156 = vmatprep.subr.mxu0 0.0
  %157 = vmatpush1.msra.mxu0 0.0
  %158 = vmatprep.subr.mxu0 0.0
  %159 = vmatpush1.msra.mxu0 0.0
  %160 = vmatprep.subr.mxu0 0.0
  %161 = vmatpush1.msra.mxu0 0.0
  %162 = vmatprep.subr.mxu0 0.0
  %163 = vmatpush1.msra.mxu0 0.0
  %164 = vmatprep.subr.mxu0 0.0
  %165 = vmatpush1.msra.mxu0 0.0
  %166 = vmatprep.subr.mxu0 0.0
  %167 = vmatpush1.msra.mxu0 0.0
  %168 = vmatprep.subr.mxu0 0.0
  %169 = vmatpush1.msra.mxu0 0.0
  %170 = vmatprep.subr.mxu0 0.0
  %171 = vmatpush1.msra.mxu0 0.0
  %172 = vmatprep.subr.mxu0 0.0
  %173 = vmatpush1.msra.mxu0 0.0
  %174 = vmatprep.subr.mxu0 0.0
  %175 = vmatpush1.msra.mxu0 0.0
  %176 = vmatprep.subr.mxu0 0.0
  %177 = vmatpush1.msra.mxu0 0.0
  %178 = vmatprep.subr.mxu0 0.0
  %179 = vmatpush1.msra.mxu0 0.0
  %180 = vmatprep.subr.mxu0 0.0
  %181 = vmatpush1.msra.mxu0 0.0
  %182 = vmatprep.subr.mxu0 0.0
  %183 = vmatpush1.msra.mxu0 0.0
  %184 = vmatprep.subr.mxu0 0.0
  %185 = vmatpush1.msra.mxu0 0.0
  %186 = vmatprep.subr.mxu0 0.0
  %187 = vmatpush1.msra.mxu0 0.0
  %188 = vmatprep.subr.mxu0 0.0
  %189 = vmatpush1.msra.mxu0 0.0
  %190 = vmatprep.subr.mxu0 0.0
  %191 = vmatpush1.msra.mxu0 0.0
  %192 = vmatprep.subr.mxu0 0.0
  %193 = vmatpush1.msra.mxu0 0.0
  %194 = vmatprep.subr.mxu0 0.0
  %195 = vmatpush1.msra.mxu0 0.0
  %196 = vmatprep.subr.mxu0 0.0
  %197 = vmatpush1.msra.mxu0 0.0
  %198 = vmatprep.subr.mxu0 0.0
  %199 = vmatpush1.msra.mxu0 0.0
  %200 = vmatprep.subr.mxu0 0.0
  %201 = vmatpush1.msra.mxu0 0.0
  %202 = vmatprep.subr.mxu0 0.0
  %203 = vmatpush1.msra.mxu0 0.0
  %204 = vmatprep.subr.mxu0 0.0
  %205 = vmatpush1.msra.mxu0 0.0
  %206 = vmatprep.subr.mxu0 0.0
  %207 = vmatpush1.msra.mxu0 0.0
  %208 = vmatprep.subr.mxu0 0.0
  %209 = vmatpush1.msra.mxu0 0.0
  %210 = vmatprep.mubr.f32.mxu0 0.0
  %211 = vmatmul.mubr.f32.gmra.mrb[0].mxu0 %v144
  %v212 = vpop.f32.mrb[0].mxu0
  %v213 = vadd.f32 %v140, %v212
  %v214 = vpop.f32.mrb[0].mxu0
  %215 = vdwg.mxu0
  %v216 = vsel %vm142, %v213, 0.0
  %217 = vadd.xlane.f32.xlu0 %v216
  %v218 = vpop.xlane.xlu0 %217
  %v219 = vrcp.pop 32.0
  %v220 = vmul.f32 %v218, %v219
  %v221 = vmul.f32 %v213, %v213
  %v222 = vsel %vm142, %v221, 0.0
  %223 = vadd.xlane.f32.xlu0 %v222
  %v224 = vpop.xlane.xlu0 %223
  %v225 = vmul.f32 %v224, %v219
  %v226 = vmul.f32 %v220, %v220
  %v227 = vsub.f32 %v225, %v226
  %v228 = vmax.f32 %v227, 0.0
  %v229 = vsub.f32 %v213, %v220
  %v230 = vadd.f32 %v228, 1e-05
  %v231 = vrsqrt.pop %v230
  %v232 = vmul.f32 %v229, %v231
  %v233 = vld [vmem:[%s5] sm:$0x1]
  %v235 = vlaneseq
  %v236 = vshrl.u32 %v235, 7
  %v237 = vsub.s32 0, %v236
  %v238 = vrot.slane %v233, %v237
  %v240 = vmul.f32 %v232, %v238
  %v241 = vld [vmem:[%s6] sm:$0x1]
  %v243 = vlaneseq
  %v244 = vshrl.u32 %v243, 7
  %v245 = vsub.s32 0, %v244
  %v246 = vrot.slane %v241, %v245
  %v248 = vadd.f32 %v240, %v246
  %v249 = vld [vmem:[%s7] sm:$0xff]
  %v250 = vld [vmem:[%s7 + $0x8] sm:$0xff]
  %v251 = vld [vmem:[%s7 + $0x10] sm:$0xff]
  %v252 = vld [vmem:[%s7 + $0x18] sm:$0xff]
  %v253 = vld [vmem:[%s8] sm:$0x1]
  %v255 = vlaneseq
  %v256 = vshrl.u32 %v255, 7
  %v257 = vsub.s32 0, %v256
  %v258 = vrot.slane %v253, %v257
  %v261 = vsel %vm142, %v248, 0
  %263 = vmatprep.subr.mxu0 0.0
  %264 = vmatpush1.msra.mxu0 %v249
  %265 = vmatprep.subr.mxu0 0.0
  %266 = vmatpush1.msra.mxu0 %v250
  %267 = vmatprep.subr.mxu0 0.0
  %268 = vmatpush1.msra.mxu0 %v251
  %269 = vmatprep.subr.mxu0 0.0
  %270 = vmatpush1.msra.mxu0 %v252
  %271 = vmatprep.subr.mxu0 0.0
  %272 = vmatpush1.msra.mxu0 0.0
  %273 = vmatprep.subr.mxu0 0.0
  %274 = vmatpush1.msra.mxu0 0.0
  %275 = vmatprep.subr.mxu0 0.0
  %276 = vmatpush1.msra.mxu0 0.0
  %277 = vmatprep.subr.mxu0 0.0
  %278 = vmatpush1.msra.mxu0 0.0
  %279 = vmatprep.subr.mxu0 0.0
  %280 = vmatpush1.msra.mxu0 0.0
  %281 = vmatprep.subr.mxu0 0.0
  %282 = vmatpush1.msra.mxu0 0.0
  %283 = vmatprep.subr.mxu0 0.0
  %284 = vmatpush1.msra.mxu0 0.0
  %285 = vmatprep.subr.mxu0 0.0
  %286 = vmatpush1.msra.mxu0 0.0
  %287 = vmatprep.subr.mxu0 0.0
  %288 = vmatpush1.msra.mxu0 0.0
  %289 = vmatprep.subr.mxu0 0.0
  %290 = vmatpush1.msra.mxu0 0.0
  %291 = vmatprep.subr.mxu0 0.0
  %292 = vmatpush1.msra.mxu0 0.0
  %293 = vmatprep.subr.mxu0 0.0
  %294 = vmatpush1.msra.mxu0 0.0
  %295 = vmatprep.subr.mxu0 0.0
  %296 = vmatpush1.msra.mxu0 0.0
  %297 = vmatprep.subr.mxu0 0.0
  %298 = vmatpush1.msra.mxu0 0.0
  %299 = vmatprep.subr.mxu0 0.0
  %300 = vmatpush1.msra.mxu0 0.0
  %301 = vmatprep.subr.mxu0 0.0
  %302 = vmatpush1.msra.mxu0 0.0
  %303 = vmatprep.subr.mxu0 0.0
  %304 = vmatpush1.msra.mxu0 0.0
  %305 = vmatprep.subr.mxu0 0.0
  %306 = vmatpush1.msra.mxu0 0.0
  %307 = vmatprep.subr.mxu0 0.0
  %308 = vmatpush1.msra.mxu0 0.0
  %309 = vmatprep.subr.mxu0 0.0
  %310 = vmatpush1.msra.mxu0 0.0
  %311 = vmatprep.subr.mxu0 0.0
  %312 = vmatpush1.msra.mxu0 0.0
  %313 = vmatprep.subr.mxu0 0.0
  %314 = vmatpush1.msra.mxu0 0.0
  %315 = vmatprep.subr.mxu0 0.0
  %316 = vmatpush1.msra.mxu0 0.0
  %317 = vmatprep.subr.mxu0 0.0
  %318 = vmatpush1.msra.mxu0 0.0
  %319 = vmatprep.subr.mxu0 0.0
  %320 = vmatpush1.msra.mxu0 0.0
  %321 = vmatprep.subr.mxu0 0.0
  %322 = vmatpush1.msra.mxu0 0.0
  %323 = vmatprep.subr.mxu0 0.0
  %324 = vmatpush1.msra.mxu0 0.0
  %325 = vmatprep.subr.mxu0 0.0
  %326 = vmatpush1.msra.mxu0 0.0
  %327 = vmatprep.mubr.f32.mxu0 0.0
  %328 = vmatmul.mubr.f32.gmra.mrb[0].mxu0 %v261
  %v329 = vpop.f32.mrb[0].mxu0
  %v330 = vadd.f32 %v258, %v329
  %v331 = vpop.f32.mrb[0].mxu0
  %332 = vdwg.mxu0
  %333 = vst [vmem:[%s9] sm:$0xff] %v330
  // Predicated region
  $region38: #{baseline_classifier_forward.1} parent=0 // pred_check
    _
  $region39: #{baseline_classifier_forward.1} parent=0 // pred_check_branch
    %335 = sbr.rel (0) target = $region41
  $region40: #{baseline_classifier_forward.1} parent=0 // pred_region
    _
  $region41: #{baseline_classifier_forward.1} parent=0 // pred_fallthru
    _
  // Predicated region
  $region42: #{baseline_classifier_forward.1} parent=0 // pred_check
    _
  $region43: #{baseline_classifier_forward.1} parent=0 // pred_check_branch
    %337 = sbr.rel (0) target = $region45
  $region44: #{baseline_classifier_forward.1} parent=0 // pred_region
    _
  $region45: #{baseline_classifier_forward.1} parent=0 // pred_fallthru
    _

</llo_original>
